<compile_context>
chip_gen: v6e
topology: v6e:2x2x1
jax: 0.10.0
libtpu: 0.0.40
codegen_flags: <defaults>
</compile_context>

<pallas_src>
import functools
import math

import jax
import jax.numpy as jnp
from jax.experimental import pallas as pl
from jax.experimental.pallas import tpu as pltpu

LANE = 128
SUBLANE = 8


def _round_up(n, m):
    return ((n + m - 1) // m) * m


def _pad2(a, rows, cols):
    return jnp.pad(a, ((0, rows - a.shape[0]), (0, cols - a.shape[1])))


def quantile_head_kernel(quant_ref, x_ref, iqn_w_ref, iqn_b_ref,
                         mlp_w_ref, mlp_b_ref, out_w_ref, out_b_ref, o_ref,
                         *, reps, rows):
    # Cosine quantile embedding: cos(i * pi * tau), i = 1..E  (VPU + EUP).
    ep = iqn_w_ref.shape[0]
    idx = jax.lax.broadcasted_iota(jnp.int32, (1, ep), 1).astype(jnp.float32)
    freq = (idx + 1.0) * math.pi                                   # (1, EP)
    emb = jnp.cos(quant_ref[...] * freq).astype(jnp.bfloat16)      # (RP, EP) bf16

    # iqn_fc + ReLU  (MXU: bf16 in, f32 accumulate).
    h = jnp.dot(emb, iqn_w_ref[...], preferred_element_type=jnp.float32)
    h = jnp.maximum(h + iqn_b_ref[...], 0.0)                       # (RP, HP) f32

    # Replicate encoded features in-kernel (torch: x.repeat(num_quantiles, 1))
    # and modulate with the quantile embedding.
    x_rep = jnp.tile(x_ref[...], (reps, 1))[:rows]                 # (RP, HP) f32
    z = (x_rep * h).astype(jnp.bfloat16)

    # MLP(hidden -> hidden) + ReLU   (layer_num = 1).
    h2 = jnp.dot(z, mlp_w_ref[...], preferred_element_type=jnp.float32)
    h2 = jnp.maximum(h2 + mlp_b_ref[...], 0.0).astype(jnp.bfloat16)

    # Final fc_block(hidden -> output), no activation; lane-dense padded store.
    out = jnp.dot(h2, out_w_ref[...], preferred_element_type=jnp.float32)
    o_ref[...] = out + out_b_ref[...]                              # (RP, AP) f32


def init_params(key, hidden_size, output_size, quantile_embedding_size):
    """Deterministic torch.nn.Linear-style init (uniform +/- 1/sqrt(fan_in))."""
    def lin(k, fan_in, fan_out):
        bound = 1.0 / math.sqrt(fan_in)
        kw, kb = jax.random.split(k)
        w = jax.random.uniform(kw, (fan_in, fan_out), minval=-bound, maxval=bound,
                               dtype=jnp.float32)
        b = jax.random.uniform(kb, (1, fan_out), minval=-bound, maxval=bound,
                               dtype=jnp.float32)
        return w, b

    k0, k1, k2 = jax.random.split(key, 3)
    iqn_w, iqn_b = lin(k0, quantile_embedding_size, hidden_size)
    mlp_w, mlp_b = lin(k1, hidden_size, hidden_size)
    out_w, out_b = lin(k2, hidden_size, output_size)
    return dict(iqn_w=iqn_w, iqn_b=iqn_b,
                mlp_w=mlp_w, mlp_b=mlp_b,
                out_w=out_w, out_b=out_b)


def quantile_head_forward(params, x, num_quantiles, key):
    """Matches QuantileHead.forward (beta_function_type='uniform' == identity)."""
    B, H = x.shape
    E = params["iqn_w"].shape[0]
    A = params["out_w"].shape[1]
    HP = _round_up(H, LANE)
    AP = _round_up(A, LANE)
    EP = _round_up(E, LANE)
    R = num_quantiles * B
    RP = _round_up(2 * R, SUBLANE)          # sublane-dense row count
    reps = -(-RP // B)                      # == 2 * num_quantiles when 2R % 8 == 0

    # Separate quantile samples for the q and logit streams, fused into one call.
    kq, kl = jax.random.split(key)
    q_quantiles = jax.random.uniform(kq, (R, 1), dtype=jnp.float32)
    logit_quantiles = jax.random.uniform(kl, (R, 1), dtype=jnp.float32)
    # beta_function 'uniform' is the identity.
    quantiles_2r = jnp.concatenate([q_quantiles, logit_quantiles], axis=0)
    quantiles_2r = jnp.pad(quantiles_2r, ((0, RP - 2 * R), (0, 0)))        # (RP, 1)

    # Pad to lane-dense shapes; cast weights to bf16 (MXU input path).
    x_pad = _pad2(x, B, HP)
    iqn_w = _pad2(params["iqn_w"], EP, HP).astype(jnp.bfloat16)
    iqn_b = _pad2(params["iqn_b"], 1, HP)
    mlp_w = _pad2(params["mlp_w"], HP, HP).astype(jnp.bfloat16)
    mlp_b = _pad2(params["mlp_b"], 1, HP)
    out_w = _pad2(params["out_w"], HP, AP).astype(jnp.bfloat16)
    out_b = _pad2(params["out_b"], 1, AP)

    args = (quantiles_2r, x_pad, iqn_w, iqn_b, mlp_w, mlp_b, out_w, out_b)

    cost = pl.CostEstimate(
        flops=2 * RP * (EP * HP + HP * HP + HP * AP),
        transcendentals=RP * EP,
        bytes_accessed=(quantiles_2r.size + x_pad.size + iqn_b.size
                        + mlp_b.size + out_b.size + RP * AP) * 4
                       + (iqn_w.size + mlp_w.size + out_w.size) * 2)

    # TODO(synk): when R (batch * num_quantiles) grows beyond a few thousand rows,
    # add a grid over rows (tile multiple of 8, weights pinned via index_map
    # (0, 0)), mark it "parallel" for megacore, and fold the logit .mean(0) into
    # an accumulator with pl.when init/finalize.
    out2r = pl.pallas_call(
        functools.partial(quantile_head_kernel, reps=reps, rows=RP),
        out_shape=jax.ShapeDtypeStruct((RP, AP), jnp.float32),
        in_specs=[pl.BlockSpec(memory_space=pltpu.MemorySpace.VMEM)
                  for _ in args],
        out_specs=pl.BlockSpec(memory_space=pltpu.MemorySpace.VMEM),
        cost_estimate=cost,
    )(*args)

    q_flat = out2r[:R, :A]
    logit_flat = out2r[R:2 * R, :A]
    q = q_flat.reshape(num_quantiles, B, A)
    logit = logit_flat.reshape(num_quantiles, B, A).mean(0)
    return {"logit": logit, "q": q, "quantiles": q_quantiles}


if __name__ == "__main__":
    hidden_size = 64
    output_size = 64
    num_quantiles = 8
    quantile_embedding_size = 128
    batch = 4

    root = jax.random.PRNGKey(0)
    k_param, k_x, k_fwd = jax.random.split(root, 3)

    params = init_params(k_param, hidden_size, output_size, quantile_embedding_size)
    x = jax.random.normal(k_x, (batch, hidden_size), dtype=jnp.float32)

    fwd = jax.jit(quantile_head_forward, static_argnums=(2,))
    out = fwd(params, x, num_quantiles, k_fwd)
    jax.block_until_ready(out)

    assert out["logit"].shape == (batch, output_size)
    assert out["q"].shape == (num_quantiles, batch, output_size)
    assert out["quantiles"].shape == (num_quantiles * batch, 1)
    assert all(jnp.all(jnp.isfinite(v)) for v in
               (out["logit"], out["q"], out["quantiles"]))
    print("KERNEL_OK")
</pallas_src>

<mosaic_0001>
module attributes {stable_mosaic.version = 11 : i64} {
  func.func @quantile_head_kernel(%arg0: memref<64x1xf32, #tpu.memory_space<vmem>>, %arg1: memref<4x128xf32, #tpu.memory_space<vmem>>, %arg2: memref<128x128xbf16, #tpu.memory_space<vmem>>, %arg3: memref<1x128xf32, #tpu.memory_space<vmem>>, %arg4: memref<128x128xbf16, #tpu.memory_space<vmem>>, %arg5: memref<1x128xf32, #tpu.memory_space<vmem>>, %arg6: memref<128x128xbf16, #tpu.memory_space<vmem>>, %arg7: memref<1x128xf32, #tpu.memory_space<vmem>>, %arg8: memref<64x128xf32, #tpu.memory_space<vmem>>) attributes {dimension_semantics = [], scalar_prefetch = 0 : i64, scratch_operands = 0 : i64, tpu.core_type = #tpu.core_type<tc>} {
    %0 = tpu.iota {dimensions = array<i32: 1>} : vector<1x128xi32>
    %1 = arith.sitofp %0 : vector<1x128xi32> to vector<1x128xf32>
    %cst = arith.constant 1.000000e+00 : f32
    %2 = vector.broadcast %cst : f32 to vector<1x128xf32>
    %3 = arith.addf %1, %2 : vector<1x128xf32>
    %cst_0 = arith.constant 3.14159274 : f32
    %4 = vector.broadcast %cst_0 : f32 to vector<1x128xf32>
    %5 = arith.mulf %3, %4 : vector<1x128xf32>
    %c0 = arith.constant 0 : index
    %c0_1 = arith.constant 0 : index
    %6 = vector.load %arg0[%c0, %c0_1] : memref<64x1xf32, #tpu.memory_space<vmem>>, vector<64x1xf32>
    %7 = vector.broadcast %6 : vector<64x1xf32> to vector<64x128xf32>
    %8 = vector.broadcast %5 : vector<1x128xf32> to vector<64x128xf32>
    %9 = arith.mulf %7, %8 : vector<64x128xf32>
    %10 = math.cos %9 : vector<64x128xf32>
    %11 = arith.truncf %10 : vector<64x128xf32> to vector<64x128xbf16>
    %c0_2 = arith.constant 0 : index
    %c0_3 = arith.constant 0 : index
    %12 = vector.load %arg2[%c0_2, %c0_3] : memref<128x128xbf16, #tpu.memory_space<vmem>>, vector<128x128xbf16>
    %cst_4 = arith.constant dense<0.000000e+00> : vector<64x128xf32>
    %13 = tpu.matmul %11, %12, %cst_4 {dimension_numbers = #tpu.dot_dimension_numbers<[1], [0], [0], [1], [0, 0, 1, 1], [], []>} : vector<64x128xbf16>, vector<128x128xbf16>, vector<64x128xf32> -> vector<64x128xf32>
    %c0_5 = arith.constant 0 : index
    %c0_6 = arith.constant 0 : index
    %14 = vector.load %arg3[%c0_5, %c0_6] : memref<1x128xf32, #tpu.memory_space<vmem>>, vector<1x128xf32>
    %15 = vector.broadcast %14 : vector<1x128xf32> to vector<64x128xf32>
    %16 = arith.addf %13, %15 : vector<64x128xf32>
    %cst_7 = arith.constant 0.000000e+00 : f32
    %17 = vector.broadcast %cst_7 : f32 to vector<64x128xf32>
    %18 = arith.maximumf %16, %17 : vector<64x128xf32>
    %c0_8 = arith.constant 0 : index
    %c0_9 = arith.constant 0 : index
    %19 = vector.load %arg1[%c0_8, %c0_9] : memref<4x128xf32, #tpu.memory_space<vmem>>, vector<4x128xf32>
    %20 = tpu.concatenate %19, %19, %19, %19, %19, %19, %19, %19, %19, %19, %19, %19, %19, %19, %19, %19 in 0 : vector<4x128xf32>, vector<4x128xf32>, vector<4x128xf32>, vector<4x128xf32>, vector<4x128xf32>, vector<4x128xf32>, vector<4x128xf32>, vector<4x128xf32>, vector<4x128xf32>, vector<4x128xf32>, vector<4x128xf32>, vector<4x128xf32>, vector<4x128xf32>, vector<4x128xf32>, vector<4x128xf32>, vector<4x128xf32> -> vector<64x128xf32>
    %21 = arith.mulf %20, %18 : vector<64x128xf32>
    %22 = arith.truncf %21 : vector<64x128xf32> to vector<64x128xbf16>
    %c0_10 = arith.constant 0 : index
    %c0_11 = arith.constant 0 : index
    %23 = vector.load %arg4[%c0_10, %c0_11] : memref<128x128xbf16, #tpu.memory_space<vmem>>, vector<128x128xbf16>
    %cst_12 = arith.constant dense<0.000000e+00> : vector<64x128xf32>
    %24 = tpu.matmul %22, %23, %cst_12 {dimension_numbers = #tpu.dot_dimension_numbers<[1], [0], [0], [1], [0, 0, 1, 1], [], []>} : vector<64x128xbf16>, vector<128x128xbf16>, vector<64x128xf32> -> vector<64x128xf32>
    %c0_13 = arith.constant 0 : index
    %c0_14 = arith.constant 0 : index
    %25 = vector.load %arg5[%c0_13, %c0_14] : memref<1x128xf32, #tpu.memory_space<vmem>>, vector<1x128xf32>
    %26 = vector.broadcast %25 : vector<1x128xf32> to vector<64x128xf32>
    %27 = arith.addf %24, %26 : vector<64x128xf32>
    %cst_15 = arith.constant 0.000000e+00 : f32
    %28 = vector.broadcast %cst_15 : f32 to vector<64x128xf32>
    %29 = arith.maximumf %27, %28 : vector<64x128xf32>
    %30 = arith.truncf %29 : vector<64x128xf32> to vector<64x128xbf16>
    %c0_16 = arith.constant 0 : index
    %c0_17 = arith.constant 0 : index
    %31 = vector.load %arg6[%c0_16, %c0_17] : memref<128x128xbf16, #tpu.memory_space<vmem>>, vector<128x128xbf16>
    %cst_18 = arith.constant dense<0.000000e+00> : vector<64x128xf32>
    %32 = tpu.matmul %30, %31, %cst_18 {dimension_numbers = #tpu.dot_dimension_numbers<[1], [0], [0], [1], [0, 0, 1, 1], [], []>} : vector<64x128xbf16>, vector<128x128xbf16>, vector<64x128xf32> -> vector<64x128xf32>
    %c0_19 = arith.constant 0 : index
    %c0_20 = arith.constant 0 : index
    %33 = vector.load %arg7[%c0_19, %c0_20] : memref<1x128xf32, #tpu.memory_space<vmem>>, vector<1x128xf32>
    %34 = vector.broadcast %33 : vector<1x128xf32> to vector<64x128xf32>
    %35 = arith.addf %32, %34 : vector<64x128xf32>
    %c0_21 = arith.constant 0 : index
    %c0_22 = arith.constant 0 : index
    %36 = vector.load %arg8[%c0_21, %c0_22] : memref<64x128xf32, #tpu.memory_space<vmem>>, vector<64x128xf32>
    tpu.vector_store %arg8[%c0_21, %c0_22], %35 {strides = array<i32>} : memref<64x128xf32, #tpu.memory_space<vmem>>, vector<64x128xf32>,
    return
  }
}

</mosaic_0001>

<llo_original>
// kernel: quantile_head_forward.3
$region0: #{quantile_head_forward.3}
  #allocation0 [shape = 'u32[]', space=smem, size = 0x4, offset = 0x4, fixed_abs, tag = 'smem constant byte address 0x4 - core index']
  #allocation1 [shape = 'u32[144,128]{1,0:T(1,128)}', space=vmem, size = 0x12000, scoped, tag = 'internal scratch']
  %s0 = inlined_call_operand.vmem [shape: f32[64,1], index: 0, kind: input, shape index: {}]
  %s1 = inlined_call_operand.vmem [shape: f32[4,128], index: 1, kind: input, shape index: {}]
  %s2 = inlined_call_operand.vmem [shape: bf16[128,128], index: 2, kind: input, shape index: {}]
  %s3 = inlined_call_operand.vmem [shape: f32[1,128], index: 3, kind: input, shape index: {}]
  %s4 = inlined_call_operand.vmem [shape: bf16[128,128], index: 4, kind: input, shape index: {}]
  %s5 = inlined_call_operand.vmem [shape: f32[1,128], index: 5, kind: input, shape index: {}]
  %s6 = inlined_call_operand.vmem [shape: bf16[128,128], index: 6, kind: input, shape index: {}]
  %s7 = inlined_call_operand.vmem [shape: f32[1,128], index: 7, kind: input, shape index: {}]
  %s8 = inlined_call_operand.vmem [shape: f32[64,128], index: 8, kind: output, shape index: {}]
  %s9 = sld [smem:[#allocation0]]
  $region42: #{quantile_head_forward.3} parent=0
    _
  %s11 = ssub.s32 1, %s9
  %s12 = scalar_select 0, %s11, %s9
  // Predicated region
  $region2: #{quantile_head_forward.3} parent=0 // pred_check
    _
  $region3: #{quantile_head_forward.3} parent=0 // pred_check_branch
    %14 = sbr.rel (0) target = $region5
  $region4: #{quantile_head_forward.3} parent=0 // pred_region
    _
  $region5: #{quantile_head_forward.3} parent=0 // pred_fallthru
    _
  // Predicated region
  $region6: #{quantile_head_forward.3} parent=0 // pred_check
    _
  $region7: #{quantile_head_forward.3} parent=0 // pred_check_branch
    %16 = sbr.rel (0) target = $region9
  $region8: #{quantile_head_forward.3} parent=0 // pred_region
    _
  $region9: #{quantile_head_forward.3} parent=0 // pred_fallthru
    _
  // Predicated region
  $region10: #{quantile_head_forward.3} parent=0 // pred_check
    _
  $region11: #{quantile_head_forward.3} parent=0 // pred_check_branch
    %18 = sbr.rel (0) target = $region13
  $region12: #{quantile_head_forward.3} parent=0 // pred_region
    _
  $region13: #{quantile_head_forward.3} parent=0 // pred_fallthru
    _
  // Predicated region
  $region14: #{quantile_head_forward.3} parent=0 // pred_check
    _
  $region15: #{quantile_head_forward.3} parent=0 // pred_check_branch
    %20 = sbr.rel (0) target = $region17
  $region16: #{quantile_head_forward.3} parent=0 // pred_region
    _
  $region17: #{quantile_head_forward.3} parent=0 // pred_fallthru
    _
  // Predicated region
  $region18: #{quantile_head_forward.3} parent=0 // pred_check
    _
  $region19: #{quantile_head_forward.3} parent=0 // pred_check_branch
    %22 = sbr.rel (0) target = $region21
  $region20: #{quantile_head_forward.3} parent=0 // pred_region
    _
  $region21: #{quantile_head_forward.3} parent=0 // pred_fallthru
    _
  // Predicated region
  $region22: #{quantile_head_forward.3} parent=0 // pred_check
    _
  $region23: #{quantile_head_forward.3} parent=0 // pred_check_branch
    %24 = sbr.rel (0) target = $region25
  $region24: #{quantile_head_forward.3} parent=0 // pred_region
    _
  $region25: #{quantile_head_forward.3} parent=0 // pred_fallthru
    _
  // Predicated region
  $region26: #{quantile_head_forward.3} parent=0 // pred_check
    _
  $region27: #{quantile_head_forward.3} parent=0 // pred_check_branch
    %26 = sbr.rel (0) target = $region29
  $region28: #{quantile_head_forward.3} parent=0 // pred_region
    _
  $region29: #{quantile_head_forward.3} parent=0 // pred_fallthru
    _
  // Predicated region
  $region30: #{quantile_head_forward.3} parent=0 // pred_check
    _
  $region31: #{quantile_head_forward.3} parent=0 // pred_check_branch
    %28 = sbr.rel (0) target = $region33
  $region32: #{quantile_head_forward.3} parent=0 // pred_region
    _
  $region33: #{quantile_head_forward.3} parent=0 // pred_fallthru
    _
  %v30 = vlaneseq
  %v31 = vand.u32 %v30, 127
  %v32 = vcvt.s32.f32 %v31
  %v33 = vadd.f32 %v32, 1.0
  %v34 = vmul.f32 %v33, 3.1415927
  %v35 = vld [vmem:[%s0] sm:$0xff]
  %v36 = vld [vmem:[%s0 + $0x8] sm:$0xff]
  %v37 = vld [vmem:[%s0 + $0x10] sm:$0xff]
  %v38 = vld [vmem:[%s0 + $0x18] sm:$0xff]
  %v39 = vld [vmem:[%s0 + $0x20] sm:$0xff]
  %v40 = vld [vmem:[%s0 + $0x28] sm:$0xff]
  %v41 = vld [vmem:[%s0 + $0x30] sm:$0xff]
  %v42 = vld [vmem:[%s0 + $0x38] sm:$0xff]
  %44 = vset.pattern.permute.xlu0 0
  %45 = vperm.xlu0 %44, %v35
  %v46 = vpop.permute.xlu0 %45
  %49 = vset.pattern.permute.xlu0 0
  %50 = vperm.xlu0 %49, %v36
  %v51 = vpop.permute.xlu0 %50
  %54 = vset.pattern.permute.xlu0 0
  %55 = vperm.xlu0 %54, %v37
  %v56 = vpop.permute.xlu0 %55
  %59 = vset.pattern.permute.xlu0 0
  %60 = vperm.xlu0 %59, %v38
  %v61 = vpop.permute.xlu0 %60
  %64 = vset.pattern.permute.xlu0 0
  %65 = vperm.xlu0 %64, %v39
  %v66 = vpop.permute.xlu0 %65
  %69 = vset.pattern.permute.xlu0 0
  %70 = vperm.xlu0 %69, %v40
  %v71 = vpop.permute.xlu0 %70
  %74 = vset.pattern.permute.xlu0 0
  %75 = vperm.xlu0 %74, %v41
  %v76 = vpop.permute.xlu0 %75
  %79 = vset.pattern.permute.xlu0 0
  %80 = vperm.xlu0 %79, %v42
  %v81 = vpop.permute.xlu0 %80
  %v83 = vmul.f32 %v46, %v34
  %v84 = vmul.f32 %v51, %v34
  %v85 = vmul.f32 %v56, %v34
  %v86 = vmul.f32 %v61, %v34
  %v87 = vmul.f32 %v66, %v34
  %v88 = vmul.f32 %v71, %v34
  %v89 = vmul.f32 %v76, %v34
  %v90 = vmul.f32 %v81, %v34
  %v91 = vand.u32 2147483647, %v83
  %vm92 = vcmp.le.f32.partialorder %v91, 0.7853982
  %vm93 = vcmp.lt.s32.totalorder %v83, 0
  %v94 = vand.u32 %v83, 2139095040
  %v95 = vshrl.u32 %v94, 23
  %v96 = vsub.s32 %v95, 127
  %v97 = vand.u32 2147483647, %v83
  %v98 = vand.u32 %v97, 8388607
  %v99 = vor.u32 %v98, 8388608
  %v100 = vsub.s32 0, %v99
  %v101 = vadd.s32 %v96, 1
  %vm102 = vcmp.gt.s32.totalorder %v101, 0
  %v103 = vsel %vm102, %v101, 0
  %v104 = vshrl.u32 %v103, 5
  %v105 = vand.u32 %v103, 31
  %v106 = vsub.s32 32, %v105
  %v107 = vshrl.u32 683565275, %v106
  %v108 = vshll.u32 683565275, %v105
  %v109 = vshrl.u32 2475754826, %v106
  %v110 = vor.u32 %v108, %v109
  %v111 = vshll.u32 2475754826, %v105
  %v112 = vshrl.u32 2131351028, %v106
  %v113 = vor.u32 %v111, %v112
  %v114 = vshll.u32 2131351028, %v105
  %v115 = vshrl.u32 2102212464, %v106
  %v116 = vor.u32 %v114, %v115
  %v117 = vshll.u32 2102212464, %v105
  %v118 = vshrl.u32 920167782, %v106
  %v119 = vor.u32 %v117, %v118
  %v120 = vshll.u32 920167782, %v105
  %v121 = vshrl.u32 1326507024, %v106
  %v122 = vor.u32 %v120, %v121
  %vm123 = vcmp.lt.s32.totalorder %v104, 1
  %vm124 = vcmp.lt.s32.totalorder %v104, 2
  %vm125 = vcmp.lt.s32.totalorder %v104, 3
  %vm126 = vcmp.lt.s32.totalorder %v104, 4
  %v127 = vsel %vm123, %v107, %v110
  %v128 = vsel %vm126, %v116, 2102212464
  %v129 = vsel %vm125, %v113, %v128
  %v130 = vsel %vm124, %v127, %v129
  %v131 = vsel %vm123, %v110, %v113
  %v132 = vsel %vm126, %v119, 920167782
  %v133 = vsel %vm125, %v116, %v132
  %v134 = vsel %vm124, %v131, %v133
  %v135 = vsel %vm123, %v113, %v116
  %v136 = vsel %vm126, %v122, 1326507024
  %v137 = vsel %vm125, %v119, %v136
  %v138 = vsel %vm124, %v135, %v137
  %v139 = vshll.u32 %v99, 8
  %v140 = vmul.u32.u64.compose %v139, %v138
  %v141 = vextract.low.u32 %v140
  %v142 = vextract.high.u32 %v140
  %v143 = vmul.u32.u64.compose %v139, %v134
  %v144 = vextract.low.u32 %v143
  %v145 = vextract.high.u32 %v143
  %v146 = vmul.u32 %v139, %v130
  %v147 = vadd.s32 %v142, %v144
  %vm148 = vc.u32 %v142, %v144
  %v149 = vadd.s32 %v145, 1
  %v150 = vsel %vm148, %v149, %v145
  %v151 = vadd.s32 %v146, %v150
  %v152 = vadd.s32 %v151, 536870912
  %v153 = vshrl.u32 %v152, 30
  %v154 = vshll.u32 %v153, 30
  %v155 = vsub.s32 %v151, %v154
  %vm156 = vcmp.lt.s32.totalorder %v155, 0
  %v157 = vsub.s32 0, %v155
  %v158 = vsel %vm156, %v157, %v155
  %v159 = vclz %v158
  %v160 = vsub.s32 %v159, 2
  %vm161 = vcmp.gt.s32.totalorder 0, %v160
  %v162 = vsel %vm161, 0, %v160
  %v163 = vsub.s32 32, %v162
  %v164 = vshll.u32 %v155, %v162
  %v165 = vshrl.u32 %v147, %v163
  %v166 = vor.u32 %v164, %v165
  %v167 = vsub.s32 4294967266, %v162
  %v168 = vadd.s32 %v167, 127
  %v169 = vshll.u32 %v168, 23
  %v170 = vor.u32 4788187, %v169
  %v171 = vand.u32 2147483647, %v170
  %v173 = vcvt.s32.f32 %v166
  %v174 = vmul.f32 %v173, %v171
  %v175 = vxor.u32 %v174, 2147483648
  %v176 = vsel %vm93, %v175, %v174
  %v177 = vsub.s32 4, %v153
  %v178 = vsel %vm93, %v177, %v153
  %v179 = vsel %vm92, %v83, %v176
  %v180 = vsel %vm92, 0, %v178
  %v181 = vcosq.f32.pop %v179
  %v182 = vsinq.f32.pop %v179
  %vm183 = vweird.f32 %v83
  %v184 = vand.u32 %v180, 3
  %vm185 = vcmp.lt.s32.totalorder %v184, 2
  %vm186 = vcmp.eq.s32.totalorder %v184, 0
  %v187 = vxor.u32 %v182, 2147483648
  %v188 = vsel %vm186, %v181, %v187
  %vm189 = vcmp.eq.s32.totalorder %v184, 2
  %v190 = vxor.u32 %v181, 2147483648
  %v191 = vsel %vm189, %v190, %v182
  %v192 = vsel %vm185, %v188, %v191
  %v193 = vsel %vm183, nan, %v192
  %v194 = vand.u32 2147483647, %v84
  %vm195 = vcmp.le.f32.partialorder %v194, 0.7853982
  %vm196 = vcmp.lt.s32.totalorder %v84, 0
  %v197 = vand.u32 %v84, 2139095040
  %v198 = vshrl.u32 %v197, 23
  %v199 = vsub.s32 %v198, 127
  %v200 = vand.u32 2147483647, %v84
  %v201 = vand.u32 %v200, 8388607
  %v202 = vor.u32 %v201, 8388608
  %v203 = vsub.s32 0, %v202
  %v204 = vadd.s32 %v199, 1
  %vm205 = vcmp.gt.s32.totalorder %v204, 0
  %v206 = vsel %vm205, %v204, 0
  %v207 = vshrl.u32 %v206, 5
  %v208 = vand.u32 %v206, 31
  %v209 = vsub.s32 32, %v208
  %v210 = vshrl.u32 683565275, %v209
  %v211 = vshll.u32 683565275, %v208
  %v212 = vshrl.u32 2475754826, %v209
  %v213 = vor.u32 %v211, %v212
  %v214 = vshll.u32 2475754826, %v208
  %v215 = vshrl.u32 2131351028, %v209
  %v216 = vor.u32 %v214, %v215
  %v217 = vshll.u32 2131351028, %v208
  %v218 = vshrl.u32 2102212464, %v209
  %v219 = vor.u32 %v217, %v218
  %v220 = vshll.u32 2102212464, %v208
  %v221 = vshrl.u32 920167782, %v209
  %v222 = vor.u32 %v220, %v221
  %v223 = vshll.u32 920167782, %v208
  %v224 = vshrl.u32 1326507024, %v209
  %v225 = vor.u32 %v223, %v224
  %vm226 = vcmp.lt.s32.totalorder %v207, 1
  %vm227 = vcmp.lt.s32.totalorder %v207, 2
  %vm228 = vcmp.lt.s32.totalorder %v207, 3
  %vm229 = vcmp.lt.s32.totalorder %v207, 4
  %v230 = vsel %vm226, %v210, %v213
  %v231 = vsel %vm229, %v219, 2102212464
  %v232 = vsel %vm228, %v216, %v231
  %v233 = vsel %vm227, %v230, %v232
  %v234 = vsel %vm226, %v213, %v216
  %v235 = vsel %vm229, %v222, 920167782
  %v236 = vsel %vm228, %v219, %v235
  %v237 = vsel %vm227, %v234, %v236
  %v238 = vsel %vm226, %v216, %v219
  %v239 = vsel %vm229, %v225, 1326507024
  %v240 = vsel %vm228, %v222, %v239
  %v241 = vsel %vm227, %v238, %v240
  %v242 = vshll.u32 %v202, 8
  %v243 = vmul.u32.u64.compose %v242, %v241
  %v244 = vextract.low.u32 %v243
  %v245 = vextract.high.u32 %v243
  %v246 = vmul.u32.u64.compose %v242, %v237
  %v247 = vextract.low.u32 %v246
  %v248 = vextract.high.u32 %v246
  %v249 = vmul.u32 %v242, %v233
  %v250 = vadd.s32 %v245, %v247
  %vm251 = vc.u32 %v245, %v247
  %v252 = vadd.s32 %v248, 1
  %v253 = vsel %vm251, %v252, %v248
  %v254 = vadd.s32 %v249, %v253
  %v255 = vadd.s32 %v254, 536870912
  %v256 = vshrl.u32 %v255, 30
  %v257 = vshll.u32 %v256, 30
  %v258 = vsub.s32 %v254, %v257
  %vm259 = vcmp.lt.s32.totalorder %v258, 0
  %v260 = vsub.s32 0, %v258
  %v261 = vsel %vm259, %v260, %v258
  %v262 = vclz %v261
  %v263 = vsub.s32 %v262, 2
  %vm264 = vcmp.gt.s32.totalorder 0, %v263
  %v265 = vsel %vm264, 0, %v263
  %v266 = vsub.s32 32, %v265
  %v267 = vshll.u32 %v258, %v265
  %v268 = vshrl.u32 %v250, %v266
  %v269 = vor.u32 %v267, %v268
  %v270 = vsub.s32 4294967266, %v265
  %v271 = vadd.s32 %v270, 127
  %v272 = vshll.u32 %v271, 23
  %v273 = vor.u32 4788187, %v272
  %v274 = vand.u32 2147483647, %v273
  %v276 = vcvt.s32.f32 %v269
  %v277 = vmul.f32 %v276, %v274
  %v278 = vxor.u32 %v277, 2147483648
  %v279 = vsel %vm196, %v278, %v277
  %v280 = vsub.s32 4, %v256
  %v281 = vsel %vm196, %v280, %v256
  %v282 = vsel %vm195, %v84, %v279
  %v283 = vsel %vm195, 0, %v281
  %v284 = vcosq.f32.pop %v282
  %v285 = vsinq.f32.pop %v282
  %vm286 = vweird.f32 %v84
  %v287 = vand.u32 %v283, 3
  %vm288 = vcmp.lt.s32.totalorder %v287, 2
  %vm289 = vcmp.eq.s32.totalorder %v287, 0
  %v290 = vxor.u32 %v285, 2147483648
  %v291 = vsel %vm289, %v284, %v290
  %vm292 = vcmp.eq.s32.totalorder %v287, 2
  %v293 = vxor.u32 %v284, 2147483648
  %v294 = vsel %vm292, %v293, %v285
  %v295 = vsel %vm288, %v291, %v294
  %v296 = vsel %vm286, nan, %v295
  %v297 = vand.u32 2147483647, %v85
  %vm298 = vcmp.le.f32.partialorder %v297, 0.7853982
  %vm299 = vcmp.lt.s32.totalorder %v85, 0
  %v300 = vand.u32 %v85, 2139095040
  %v301 = vshrl.u32 %v300, 23
  %v302 = vsub.s32 %v301, 127
  %v303 = vand.u32 2147483647, %v85
  %v304 = vand.u32 %v303, 8388607
  %v305 = vor.u32 %v304, 8388608
  %v306 = vsub.s32 0, %v305
  %v307 = vadd.s32 %v302, 1
  %vm308 = vcmp.gt.s32.totalorder %v307, 0
  %v309 = vsel %vm308, %v307, 0
  %v310 = vshrl.u32 %v309, 5
  %v311 = vand.u32 %v309, 31
  %v312 = vsub.s32 32, %v311
  %v313 = vshrl.u32 683565275, %v312
  %v314 = vshll.u32 683565275, %v311
  %v315 = vshrl.u32 2475754826, %v312
  %v316 = vor.u32 %v314, %v315
  %v317 = vshll.u32 2475754826, %v311
  %v318 = vshrl.u32 2131351028, %v312
  %v319 = vor.u32 %v317, %v318
  %v320 = vshll.u32 2131351028, %v311
  %v321 = vshrl.u32 2102212464, %v312
  %v322 = vor.u32 %v320, %v321
  %v323 = vshll.u32 2102212464, %v311
  %v324 = vshrl.u32 920167782, %v312
  %v325 = vor.u32 %v323, %v324
  %v326 = vshll.u32 920167782, %v311
  %v327 = vshrl.u32 1326507024, %v312
  %v328 = vor.u32 %v326, %v327
  %vm329 = vcmp.lt.s32.totalorder %v310, 1
  %vm330 = vcmp.lt.s32.totalorder %v310, 2
  %vm331 = vcmp.lt.s32.totalorder %v310, 3
  %vm332 = vcmp.lt.s32.totalorder %v310, 4
  %v333 = vsel %vm329, %v313, %v316
  %v334 = vsel %vm332, %v322, 2102212464
  %v335 = vsel %vm331, %v319, %v334
  %v336 = vsel %vm330, %v333, %v335
  %v337 = vsel %vm329, %v316, %v319
  %v338 = vsel %vm332, %v325, 920167782
  %v339 = vsel %vm331, %v322, %v338
  %v340 = vsel %vm330, %v337, %v339
  %v341 = vsel %vm329, %v319, %v322
  %v342 = vsel %vm332, %v328, 1326507024
  %v343 = vsel %vm331, %v325, %v342
  %v344 = vsel %vm330, %v341, %v343
  %v345 = vshll.u32 %v305, 8
  %v346 = vmul.u32.u64.compose %v345, %v344
  %v347 = vextract.low.u32 %v346
  %v348 = vextract.high.u32 %v346
  %v349 = vmul.u32.u64.compose %v345, %v340
  %v350 = vextract.low.u32 %v349
  %v351 = vextract.high.u32 %v349
  %v352 = vmul.u32 %v345, %v336
  %v353 = vadd.s32 %v348, %v350
  %vm354 = vc.u32 %v348, %v350
  %v355 = vadd.s32 %v351, 1
  %v356 = vsel %vm354, %v355, %v351
  %v357 = vadd.s32 %v352, %v356
  %v358 = vadd.s32 %v357, 536870912
  %v359 = vshrl.u32 %v358, 30
  %v360 = vshll.u32 %v359, 30
  %v361 = vsub.s32 %v357, %v360
  %vm362 = vcmp.lt.s32.totalorder %v361, 0
  %v363 = vsub.s32 0, %v361
  %v364 = vsel %vm362, %v363, %v361
  %v365 = vclz %v364
  %v366 = vsub.s32 %v365, 2
  %vm367 = vcmp.gt.s32.totalorder 0, %v366
  %v368 = vsel %vm367, 0, %v366
  %v369 = vsub.s32 32, %v368
  %v370 = vshll.u32 %v361, %v368
  %v371 = vshrl.u32 %v353, %v369
  %v372 = vor.u32 %v370, %v371
  %v373 = vsub.s32 4294967266, %v368
  %v374 = vadd.s32 %v373, 127
  %v375 = vshll.u32 %v374, 23
  %v376 = vor.u32 4788187, %v375
  %v377 = vand.u32 2147483647, %v376
  %v379 = vcvt.s32.f32 %v372
  %v380 = vmul.f32 %v379, %v377
  %v381 = vxor.u32 %v380, 2147483648
  %v382 = vsel %vm299, %v381, %v380
  %v383 = vsub.s32 4, %v359
  %v384 = vsel %vm299, %v383, %v359
  %v385 = vsel %vm298, %v85, %v382
  %v386 = vsel %vm298, 0, %v384
  %v387 = vcosq.f32.pop %v385
  %v388 = vsinq.f32.pop %v385
  %vm389 = vweird.f32 %v85
  %v390 = vand.u32 %v386, 3
  %vm391 = vcmp.lt.s32.totalorder %v390, 2
  %vm392 = vcmp.eq.s32.totalorder %v390, 0
  %v393 = vxor.u32 %v388, 2147483648
  %v394 = vsel %vm392, %v387, %v393
  %vm395 = vcmp.eq.s32.totalorder %v390, 2
  %v396 = vxor.u32 %v387, 2147483648
  %v397 = vsel %vm395, %v396, %v388
  %v398 = vsel %vm391, %v394, %v397
  %v399 = vsel %vm389, nan, %v398
  %v400 = vand.u32 2147483647, %v86
  %vm401 = vcmp.le.f32.partialorder %v400, 0.7853982
  %vm402 = vcmp.lt.s32.totalorder %v86, 0
  %v403 = vand.u32 %v86, 2139095040
  %v404 = vshrl.u32 %v403, 23
  %v405 = vsub.s32 %v404, 127
  %v406 = vand.u32 2147483647, %v86
  %v407 = vand.u32 %v406, 8388607
  %v408 = vor.u32 %v407, 8388608
  %v409 = vsub.s32 0, %v408
  %v410 = vadd.s32 %v405, 1
  %vm411 = vcmp.gt.s32.totalorder %v410, 0
  %v412 = vsel %vm411, %v410, 0
  %v413 = vshrl.u32 %v412, 5
  %v414 = vand.u32 %v412, 31
  %v415 = vsub.s32 32, %v414
  %v416 = vshrl.u32 683565275, %v415
  %v417 = vshll.u32 683565275, %v414
  %v418 = vshrl.u32 2475754826, %v415
  %v419 = vor.u32 %v417, %v418
  %v420 = vshll.u32 2475754826, %v414
  %v421 = vshrl.u32 2131351028, %v415
  %v422 = vor.u32 %v420, %v421
  %v423 = vshll.u32 2131351028, %v414
  %v424 = vshrl.u32 2102212464, %v415
  %v425 = vor.u32 %v423, %v424
  %v426 = vshll.u32 2102212464, %v414
  %v427 = vshrl.u32 920167782, %v415
  %v428 = vor.u32 %v426, %v427
  %v429 = vshll.u32 920167782, %v414
  %v430 = vshrl.u32 1326507024, %v415
  %v431 = vor.u32 %v429, %v430
  %vm432 = vcmp.lt.s32.totalorder %v413, 1
  %vm433 = vcmp.lt.s32.totalorder %v413, 2
  %vm434 = vcmp.lt.s32.totalorder %v413, 3
  %vm435 = vcmp.lt.s32.totalorder %v413, 4
  %v436 = vsel %vm432, %v416, %v419
  %v437 = vsel %vm435, %v425, 2102212464
  %v438 = vsel %vm434, %v422, %v437
  %v439 = vsel %vm433, %v436, %v438
  %v440 = vsel %vm432, %v419, %v422
  %v441 = vsel %vm435, %v428, 920167782
  %v442 = vsel %vm434, %v425, %v441
  %v443 = vsel %vm433, %v440, %v442
  %v444 = vsel %vm432, %v422, %v425
  %v445 = vsel %vm435, %v431, 1326507024
  %v446 = vsel %vm434, %v428, %v445
  %v447 = vsel %vm433, %v444, %v446
  %v448 = vshll.u32 %v408, 8
  %v449 = vmul.u32.u64.compose %v448, %v447
  %v450 = vextract.low.u32 %v449
  %v451 = vextract.high.u32 %v449
  %v452 = vmul.u32.u64.compose %v448, %v443
  %v453 = vextract.low.u32 %v452
  %v454 = vextract.high.u32 %v452
  %v455 = vmul.u32 %v448, %v439
  %v456 = vadd.s32 %v451, %v453
  %vm457 = vc.u32 %v451, %v453
  %v458 = vadd.s32 %v454, 1
  %v459 = vsel %vm457, %v458, %v454
  %v460 = vadd.s32 %v455, %v459
  %v461 = vadd.s32 %v460, 536870912
  %v462 = vshrl.u32 %v461, 30
  %v463 = vshll.u32 %v462, 30
  %v464 = vsub.s32 %v460, %v463
  %vm465 = vcmp.lt.s32.totalorder %v464, 0
  %v466 = vsub.s32 0, %v464
  %v467 = vsel %vm465, %v466, %v464
  %v468 = vclz %v467
  %v469 = vsub.s32 %v468, 2
  %vm470 = vcmp.gt.s32.totalorder 0, %v469
  %v471 = vsel %vm470, 0, %v469
  %v472 = vsub.s32 32, %v471
  %v473 = vshll.u32 %v464, %v471
  %v474 = vshrl.u32 %v456, %v472
  %v475 = vor.u32 %v473, %v474
  %v476 = vsub.s32 4294967266, %v471
  %v477 = vadd.s32 %v476, 127
  %v478 = vshll.u32 %v477, 23
  %v479 = vor.u32 4788187, %v478
  %v480 = vand.u32 2147483647, %v479
  %v482 = vcvt.s32.f32 %v475
  %v483 = vmul.f32 %v482, %v480
  %v484 = vxor.u32 %v483, 2147483648
  %v485 = vsel %vm402, %v484, %v483
  %v486 = vsub.s32 4, %v462
  %v487 = vsel %vm402, %v486, %v462
  %v488 = vsel %vm401, %v86, %v485
  %v489 = vsel %vm401, 0, %v487
  %v490 = vcosq.f32.pop %v488
  %v491 = vsinq.f32.pop %v488
  %vm492 = vweird.f32 %v86
  %v493 = vand.u32 %v489, 3
  %vm494 = vcmp.lt.s32.totalorder %v493, 2
  %vm495 = vcmp.eq.s32.totalorder %v493, 0
  %v496 = vxor.u32 %v491, 2147483648
  %v497 = vsel %vm495, %v490, %v496
  %vm498 = vcmp.eq.s32.totalorder %v493, 2
  %v499 = vxor.u32 %v490, 2147483648
  %v500 = vsel %vm498, %v499, %v491
  %v501 = vsel %vm494, %v497, %v500
  %v502 = vsel %vm492, nan, %v501
  %v503 = vand.u32 2147483647, %v87
  %vm504 = vcmp.le.f32.partialorder %v503, 0.7853982
  %vm505 = vcmp.lt.s32.totalorder %v87, 0
  %v506 = vand.u32 %v87, 2139095040
  %v507 = vshrl.u32 %v506, 23
  %v508 = vsub.s32 %v507, 127
  %v509 = vand.u32 2147483647, %v87
  %v510 = vand.u32 %v509, 8388607
  %v511 = vor.u32 %v510, 8388608
  %v512 = vsub.s32 0, %v511
  %v513 = vadd.s32 %v508, 1
  %vm514 = vcmp.gt.s32.totalorder %v513, 0
  %v515 = vsel %vm514, %v513, 0
  %v516 = vshrl.u32 %v515, 5
  %v517 = vand.u32 %v515, 31
  %v518 = vsub.s32 32, %v517
  %v519 = vshrl.u32 683565275, %v518
  %v520 = vshll.u32 683565275, %v517
  %v521 = vshrl.u32 2475754826, %v518
  %v522 = vor.u32 %v520, %v521
  %v523 = vshll.u32 2475754826, %v517
  %v524 = vshrl.u32 2131351028, %v518
  %v525 = vor.u32 %v523, %v524
  %v526 = vshll.u32 2131351028, %v517
  %v527 = vshrl.u32 2102212464, %v518
  %v528 = vor.u32 %v526, %v527
  %v529 = vshll.u32 2102212464, %v517
  %v530 = vshrl.u32 920167782, %v518
  %v531 = vor.u32 %v529, %v530
  %v532 = vshll.u32 920167782, %v517
  %v533 = vshrl.u32 1326507024, %v518
  %v534 = vor.u32 %v532, %v533
  %vm535 = vcmp.lt.s32.totalorder %v516, 1
  %vm536 = vcmp.lt.s32.totalorder %v516, 2
  %vm537 = vcmp.lt.s32.totalorder %v516, 3
  %vm538 = vcmp.lt.s32.totalorder %v516, 4
  %v539 = vsel %vm535, %v519, %v522
  %v540 = vsel %vm538, %v528, 2102212464
  %v541 = vsel %vm537, %v525, %v540
  %v542 = vsel %vm536, %v539, %v541
  %v543 = vsel %vm535, %v522, %v525
  %v544 = vsel %vm538, %v531, 920167782
  %v545 = vsel %vm537, %v528, %v544
  %v546 = vsel %vm536, %v543, %v545
  %v547 = vsel %vm535, %v525, %v528
  %v548 = vsel %vm538, %v534, 1326507024
  %v549 = vsel %vm537, %v531, %v548
  %v550 = vsel %vm536, %v547, %v549
  %v551 = vshll.u32 %v511, 8
  %v552 = vmul.u32.u64.compose %v551, %v550
  %v553 = vextract.low.u32 %v552
  %v554 = vextract.high.u32 %v552
  %v555 = vmul.u32.u64.compose %v551, %v546
  %v556 = vextract.low.u32 %v555
  %v557 = vextract.high.u32 %v555
  %v558 = vmul.u32 %v551, %v542
  %v559 = vadd.s32 %v554, %v556
  %vm560 = vc.u32 %v554, %v556
  %v561 = vadd.s32 %v557, 1
  %v562 = vsel %vm560, %v561, %v557
  %v563 = vadd.s32 %v558, %v562
  %v564 = vadd.s32 %v563, 536870912
  %v565 = vshrl.u32 %v564, 30
  %v566 = vshll.u32 %v565, 30
  %v567 = vsub.s32 %v563, %v566
  %vm568 = vcmp.lt.s32.totalorder %v567, 0
  %v569 = vsub.s32 0, %v567
  %v570 = vsel %vm568, %v569, %v567
  %v571 = vclz %v570
  %v572 = vsub.s32 %v571, 2
  %vm573 = vcmp.gt.s32.totalorder 0, %v572
  %v574 = vsel %vm573, 0, %v572
  %v575 = vsub.s32 32, %v574
  %v576 = vshll.u32 %v567, %v574
  %v577 = vshrl.u32 %v559, %v575
  %v578 = vor.u32 %v576, %v577
  %v579 = vsub.s32 4294967266, %v574
  %v580 = vadd.s32 %v579, 127
  %v581 = vshll.u32 %v580, 23
  %v582 = vor.u32 4788187, %v581
  %v583 = vand.u32 2147483647, %v582
  %v585 = vcvt.s32.f32 %v578
  %v586 = vmul.f32 %v585, %v583
  %v587 = vxor.u32 %v586, 2147483648
  %v588 = vsel %vm505, %v587, %v586
  %v589 = vsub.s32 4, %v565
  %v590 = vsel %vm505, %v589, %v565
  %v591 = vsel %vm504, %v87, %v588
  %v592 = vsel %vm504, 0, %v590
  %v593 = vcosq.f32.pop %v591
  %v594 = vsinq.f32.pop %v591
  %vm595 = vweird.f32 %v87
  %v596 = vand.u32 %v592, 3
  %vm597 = vcmp.lt.s32.totalorder %v596, 2
  %vm598 = vcmp.eq.s32.totalorder %v596, 0
  %v599 = vxor.u32 %v594, 2147483648
  %v600 = vsel %vm598, %v593, %v599
  %vm601 = vcmp.eq.s32.totalorder %v596, 2
  %v602 = vxor.u32 %v593, 2147483648
  %v603 = vsel %vm601, %v602, %v594
  %v604 = vsel %vm597, %v600, %v603
  %v605 = vsel %vm595, nan, %v604
  %v606 = vand.u32 2147483647, %v88
  %vm607 = vcmp.le.f32.partialorder %v606, 0.7853982
  %vm608 = vcmp.lt.s32.totalorder %v88, 0
  %v609 = vand.u32 %v88, 2139095040
  %v610 = vshrl.u32 %v609, 23
  %v611 = vsub.s32 %v610, 127
  %v612 = vand.u32 2147483647, %v88
  %v613 = vand.u32 %v612, 8388607
  %v614 = vor.u32 %v613, 8388608
  %v615 = vsub.s32 0, %v614
  %v616 = vadd.s32 %v611, 1
  %vm617 = vcmp.gt.s32.totalorder %v616, 0
  %v618 = vsel %vm617, %v616, 0
  %v619 = vshrl.u32 %v618, 5
  %v620 = vand.u32 %v618, 31
  %v621 = vsub.s32 32, %v620
  %v622 = vshrl.u32 683565275, %v621
  %v623 = vshll.u32 683565275, %v620
  %v624 = vshrl.u32 2475754826, %v621
  %v625 = vor.u32 %v623, %v624
  %v626 = vshll.u32 2475754826, %v620
  %v627 = vshrl.u32 2131351028, %v621
  %v628 = vor.u32 %v626, %v627
  %v629 = vshll.u32 2131351028, %v620
  %v630 = vshrl.u32 2102212464, %v621
  %v631 = vor.u32 %v629, %v630
  %v632 = vshll.u32 2102212464, %v620
  %v633 = vshrl.u32 920167782, %v621
  %v634 = vor.u32 %v632, %v633
  %v635 = vshll.u32 920167782, %v620
  %v636 = vshrl.u32 1326507024, %v621
  %v637 = vor.u32 %v635, %v636
  %vm638 = vcmp.lt.s32.totalorder %v619, 1
  %vm639 = vcmp.lt.s32.totalorder %v619, 2
  %vm640 = vcmp.lt.s32.totalorder %v619, 3
  %vm641 = vcmp.lt.s32.totalorder %v619, 4
  %v642 = vsel %vm638, %v622, %v625
  %v643 = vsel %vm641, %v631, 2102212464
  %v644 = vsel %vm640, %v628, %v643
  %v645 = vsel %vm639, %v642, %v644
  %v646 = vsel %vm638, %v625, %v628
  %v647 = vsel %vm641, %v634, 920167782
  %v648 = vsel %vm640, %v631, %v647
  %v649 = vsel %vm639, %v646, %v648
  %v650 = vsel %vm638, %v628, %v631
  %v651 = vsel %vm641, %v637, 1326507024
  %v652 = vsel %vm640, %v634, %v651
  %v653 = vsel %vm639, %v650, %v652
  %v654 = vshll.u32 %v614, 8
  %v655 = vmul.u32.u64.compose %v654, %v653
  %v656 = vextract.low.u32 %v655
  %v657 = vextract.high.u32 %v655
  %v658 = vmul.u32.u64.compose %v654, %v649
  %v659 = vextract.low.u32 %v658
  %v660 = vextract.high.u32 %v658
  %v661 = vmul.u32 %v654, %v645
  %v662 = vadd.s32 %v657, %v659
  %vm663 = vc.u32 %v657, %v659
  %v664 = vadd.s32 %v660, 1
  %v665 = vsel %vm663, %v664, %v660
  %v666 = vadd.s32 %v661, %v665
  %v667 = vadd.s32 %v666, 536870912
  %v668 = vshrl.u32 %v667, 30
  %v669 = vshll.u32 %v668, 30
  %v670 = vsub.s32 %v666, %v669
  %vm671 = vcmp.lt.s32.totalorder %v670, 0
  %v672 = vsub.s32 0, %v670
  %v673 = vsel %vm671, %v672, %v670
  %v674 = vclz %v673
  %v675 = vsub.s32 %v674, 2
  %vm676 = vcmp.gt.s32.totalorder 0, %v675
  %v677 = vsel %vm676, 0, %v675
  %v678 = vsub.s32 32, %v677
  %v679 = vshll.u32 %v670, %v677
  %v680 = vshrl.u32 %v662, %v678
  %v681 = vor.u32 %v679, %v680
  %v682 = vsub.s32 4294967266, %v677
  %v683 = vadd.s32 %v682, 127
  %v684 = vshll.u32 %v683, 23
  %v685 = vor.u32 4788187, %v684
  %v686 = vand.u32 2147483647, %v685
  %v688 = vcvt.s32.f32 %v681
  %v689 = vmul.f32 %v688, %v686
  %v690 = vxor.u32 %v689, 2147483648
  %v691 = vsel %vm608, %v690, %v689
  %v692 = vsub.s32 4, %v668
  %v693 = vsel %vm608, %v692, %v668
  %v694 = vsel %vm607, %v88, %v691
  %v695 = vsel %vm607, 0, %v693
  %v696 = vcosq.f32.pop %v694
  %v697 = vsinq.f32.pop %v694
  %vm698 = vweird.f32 %v88
  %v699 = vand.u32 %v695, 3
  %vm700 = vcmp.lt.s32.totalorder %v699, 2
  %vm701 = vcmp.eq.s32.totalorder %v699, 0
  %v702 = vxor.u32 %v697, 2147483648
  %v703 = vsel %vm701, %v696, %v702
  %vm704 = vcmp.eq.s32.totalorder %v699, 2
  %v705 = vxor.u32 %v696, 2147483648
  %v706 = vsel %vm704, %v705, %v697
  %v707 = vsel %vm700, %v703, %v706
  %v708 = vsel %vm698, nan, %v707
  %v709 = vand.u32 2147483647, %v89
  %vm710 = vcmp.le.f32.partialorder %v709, 0.7853982
  %vm711 = vcmp.lt.s32.totalorder %v89, 0
  %v712 = vand.u32 %v89, 2139095040
  %v713 = vshrl.u32 %v712, 23
  %v714 = vsub.s32 %v713, 127
  %v715 = vand.u32 2147483647, %v89
  %v716 = vand.u32 %v715, 8388607
  %v717 = vor.u32 %v716, 8388608
  %v718 = vsub.s32 0, %v717
  %v719 = vadd.s32 %v714, 1
  %vm720 = vcmp.gt.s32.totalorder %v719, 0
  %v721 = vsel %vm720, %v719, 0
  %v722 = vshrl.u32 %v721, 5
  %v723 = vand.u32 %v721, 31
  %v724 = vsub.s32 32, %v723
  %v725 = vshrl.u32 683565275, %v724
  %v726 = vshll.u32 683565275, %v723
  %v727 = vshrl.u32 2475754826, %v724
  %v728 = vor.u32 %v726, %v727
  %v729 = vshll.u32 2475754826, %v723
  %v730 = vshrl.u32 2131351028, %v724
  %v731 = vor.u32 %v729, %v730
  %v732 = vshll.u32 2131351028, %v723
  %v733 = vshrl.u32 2102212464, %v724
  %v734 = vor.u32 %v732, %v733
  %v735 = vshll.u32 2102212464, %v723
  %v736 = vshrl.u32 920167782, %v724
  %v737 = vor.u32 %v735, %v736
  %v738 = vshll.u32 920167782, %v723
  %v739 = vshrl.u32 1326507024, %v724
  %v740 = vor.u32 %v738, %v739
  %vm741 = vcmp.lt.s32.totalorder %v722, 1
  %vm742 = vcmp.lt.s32.totalorder %v722, 2
  %vm743 = vcmp.lt.s32.totalorder %v722, 3
  %vm744 = vcmp.lt.s32.totalorder %v722, 4
  %v745 = vsel %vm741, %v725, %v728
  %v746 = vsel %vm744, %v734, 2102212464
  %v747 = vsel %vm743, %v731, %v746
  %v748 = vsel %vm742, %v745, %v747
  %v749 = vsel %vm741, %v728, %v731
  %v750 = vsel %vm744, %v737, 920167782
  %v751 = vsel %vm743, %v734, %v750
  %v752 = vsel %vm742, %v749, %v751
  %v753 = vsel %vm741, %v731, %v734
  %v754 = vsel %vm744, %v740, 1326507024
  %v755 = vsel %vm743, %v737, %v754
  %v756 = vsel %vm742, %v753, %v755
  %v757 = vshll.u32 %v717, 8
  %v758 = vmul.u32.u64.compose %v757, %v756
  %v759 = vextract.low.u32 %v758
  %v760 = vextract.high.u32 %v758
  %v761 = vmul.u32.u64.compose %v757, %v752
  %v762 = vextract.low.u32 %v761
  %v763 = vextract.high.u32 %v761
  %v764 = vmul.u32 %v757, %v748
  %v765 = vadd.s32 %v760, %v762
  %vm766 = vc.u32 %v760, %v762
  %v767 = vadd.s32 %v763, 1
  %v768 = vsel %vm766, %v767, %v763
  %v769 = vadd.s32 %v764, %v768
  %v770 = vadd.s32 %v769, 536870912
  %v771 = vshrl.u32 %v770, 30
  %v772 = vshll.u32 %v771, 30
  %v773 = vsub.s32 %v769, %v772
  %vm774 = vcmp.lt.s32.totalorder %v773, 0
  %v775 = vsub.s32 0, %v773
  %v776 = vsel %vm774, %v775, %v773
  %v777 = vclz %v776
  %v778 = vsub.s32 %v777, 2
  %vm779 = vcmp.gt.s32.totalorder 0, %v778
  %v780 = vsel %vm779, 0, %v778
  %v781 = vsub.s32 32, %v780
  %v782 = vshll.u32 %v773, %v780
  %v783 = vshrl.u32 %v765, %v781
  %v784 = vor.u32 %v782, %v783
  %v785 = vsub.s32 4294967266, %v780
  %v786 = vadd.s32 %v785, 127
  %v787 = vshll.u32 %v786, 23
  %v788 = vor.u32 4788187, %v787
  %v789 = vand.u32 2147483647, %v788
  %v791 = vcvt.s32.f32 %v784
  %v792 = vmul.f32 %v791, %v789
  %v793 = vxor.u32 %v792, 2147483648
  %v794 = vsel %vm711, %v793, %v792
  %v795 = vsub.s32 4, %v771
  %v796 = vsel %vm711, %v795, %v771
  %v797 = vsel %vm710, %v89, %v794
  %v798 = vsel %vm710, 0, %v796
  %v799 = vcosq.f32.pop %v797
  %v800 = vsinq.f32.pop %v797
  %vm801 = vweird.f32 %v89
  %v802 = vand.u32 %v798, 3
  %vm803 = vcmp.lt.s32.totalorder %v802, 2
  %vm804 = vcmp.eq.s32.totalorder %v802, 0
  %v805 = vxor.u32 %v800, 2147483648
  %v806 = vsel %vm804, %v799, %v805
  %vm807 = vcmp.eq.s32.totalorder %v802, 2
  %v808 = vxor.u32 %v799, 2147483648
  %v809 = vsel %vm807, %v808, %v800
  %v810 = vsel %vm803, %v806, %v809
  %v811 = vsel %vm801, nan, %v810
  %v812 = vand.u32 2147483647, %v90
  %vm813 = vcmp.le.f32.partialorder %v812, 0.7853982
  %vm814 = vcmp.lt.s32.totalorder %v90, 0
  %v815 = vand.u32 %v90, 2139095040
  %v816 = vshrl.u32 %v815, 23
  %v817 = vsub.s32 %v816, 127
  %v818 = vand.u32 2147483647, %v90
  %v819 = vand.u32 %v818, 8388607
  %v820 = vor.u32 %v819, 8388608
  %v821 = vsub.s32 0, %v820
  %v822 = vadd.s32 %v817, 1
  %vm823 = vcmp.gt.s32.totalorder %v822, 0
  %v824 = vsel %vm823, %v822, 0
  %v825 = vshrl.u32 %v824, 5
  %v826 = vand.u32 %v824, 31
  %v827 = vsub.s32 32, %v826
  %v828 = vshrl.u32 683565275, %v827
  %v829 = vshll.u32 683565275, %v826
  %v830 = vshrl.u32 2475754826, %v827
  %v831 = vor.u32 %v829, %v830
  %v832 = vshll.u32 2475754826, %v826
  %v833 = vshrl.u32 2131351028, %v827
  %v834 = vor.u32 %v832, %v833
  %v835 = vshll.u32 2131351028, %v826
  %v836 = vshrl.u32 2102212464, %v827
  %v837 = vor.u32 %v835, %v836
  %v838 = vshll.u32 2102212464, %v826
  %v839 = vshrl.u32 920167782, %v827
  %v840 = vor.u32 %v838, %v839
  %v841 = vshll.u32 920167782, %v826
  %v842 = vshrl.u32 1326507024, %v827
  %v843 = vor.u32 %v841, %v842
  %vm844 = vcmp.lt.s32.totalorder %v825, 1
  %vm845 = vcmp.lt.s32.totalorder %v825, 2
  %vm846 = vcmp.lt.s32.totalorder %v825, 3
  %vm847 = vcmp.lt.s32.totalorder %v825, 4
  %v848 = vsel %vm844, %v828, %v831
  %v849 = vsel %vm847, %v837, 2102212464
  %v850 = vsel %vm846, %v834, %v849
  %v851 = vsel %vm845, %v848, %v850
  %v852 = vsel %vm844, %v831, %v834
  %v853 = vsel %vm847, %v840, 920167782
  %v854 = vsel %vm846, %v837, %v853
  %v855 = vsel %vm845, %v852, %v854
  %v856 = vsel %vm844, %v834, %v837
  %v857 = vsel %vm847, %v843, 1326507024
  %v858 = vsel %vm846, %v840, %v857
  %v859 = vsel %vm845, %v856, %v858
  %v860 = vshll.u32 %v820, 8
  %v861 = vmul.u32.u64.compose %v860, %v859
  %v862 = vextract.low.u32 %v861
  %v863 = vextract.high.u32 %v861
  %v864 = vmul.u32.u64.compose %v860, %v855
  %v865 = vextract.low.u32 %v864
  %v866 = vextract.high.u32 %v864
  %v867 = vmul.u32 %v860, %v851
  %v868 = vadd.s32 %v863, %v865
  %vm869 = vc.u32 %v863, %v865
  %v870 = vadd.s32 %v866, 1
  %v871 = vsel %vm869, %v870, %v866
  %v872 = vadd.s32 %v867, %v871
  %v873 = vadd.s32 %v872, 536870912
  %v874 = vshrl.u32 %v873, 30
  %v875 = vshll.u32 %v874, 30
  %v876 = vsub.s32 %v872, %v875
  %vm877 = vcmp.lt.s32.totalorder %v876, 0
  %v878 = vsub.s32 0, %v876
  %v879 = vsel %vm877, %v878, %v876
  %v880 = vclz %v879
  %v881 = vsub.s32 %v880, 2
  %vm882 = vcmp.gt.s32.totalorder 0, %v881
  %v883 = vsel %vm882, 0, %v881
  %v884 = vsub.s32 32, %v883
  %v885 = vshll.u32 %v876, %v883
  %v886 = vshrl.u32 %v868, %v884
  %v887 = vor.u32 %v885, %v886
  %v888 = vsub.s32 4294967266, %v883
  %v889 = vadd.s32 %v888, 127
  %v890 = vshll.u32 %v889, 23
  %v891 = vor.u32 4788187, %v890
  %v892 = vand.u32 2147483647, %v891
  %v894 = vcvt.s32.f32 %v887
  %v895 = vmul.f32 %v894, %v892
  %v896 = vxor.u32 %v895, 2147483648
  %v897 = vsel %vm814, %v896, %v895
  %v898 = vsub.s32 4, %v874
  %v899 = vsel %vm814, %v898, %v874
  %v900 = vsel %vm813, %v90, %v897
  %v901 = vsel %vm813, 0, %v899
  %v902 = vcosq.f32.pop %v900
  %v903 = vsinq.f32.pop %v900
  %vm904 = vweird.f32 %v90
  %v905 = vand.u32 %v901, 3
  %vm906 = vcmp.lt.s32.totalorder %v905, 2
  %vm907 = vcmp.eq.s32.totalorder %v905, 0
  %v908 = vxor.u32 %v903, 2147483648
  %v909 = vsel %vm907, %v902, %v908
  %vm910 = vcmp.eq.s32.totalorder %v905, 2
  %v911 = vxor.u32 %v902, 2147483648
  %v912 = vsel %vm910, %v911, %v903
  %v913 = vsel %vm906, %v909, %v912
  %v914 = vsel %vm904, nan, %v913
  %v915 = vpack.c.bf16 %v296, %v193
  %v916 = vpack.c.bf16 %v502, %v399
  %v917 = vpack.c.bf16 %v708, %v605
  %v918 = vpack.c.bf16 %v914, %v811
  %v919 = vld [vmem:[%s2] sm:$0xf]
  %v920 = vld [vmem:[%s2 + $0x4] sm:$0xf]
  %v921 = vld [vmem:[%s2 + $0x8] sm:$0xf]
  %v922 = vld [vmem:[%s2 + $0xc] sm:$0xf]
  %v923 = vld [vmem:[%s2 + $0x10] sm:$0xf]
  %v924 = vld [vmem:[%s2 + $0x14] sm:$0xf]
  %v925 = vld [vmem:[%s2 + $0x18] sm:$0xf]
  %v926 = vld [vmem:[%s2 + $0x1c] sm:$0xf]
  %v927 = vld [vmem:[%s2 + $0x20] sm:$0xf]
  %v928 = vld [vmem:[%s2 + $0x24] sm:$0xf]
  %v929 = vld [vmem:[%s2 + $0x28] sm:$0xf]
  %v930 = vld [vmem:[%s2 + $0x2c] sm:$0xf]
  %v931 = vld [vmem:[%s2 + $0x30] sm:$0xf]
  %v932 = vld [vmem:[%s2 + $0x34] sm:$0xf]
  %v933 = vld [vmem:[%s2 + $0x38] sm:$0xf]
  %v934 = vld [vmem:[%s2 + $0x3c] sm:$0xf]
  %v935 = vld [vmem:[%s3] sm:$0x1]
  %v937 = vlaneseq
  %v938 = vshrl.u32 %v937, 7
  %v939 = vsub.s32 0, %v938
  %v940 = vrot.slane %v935, %v939
  %v958 = vunpack.c.l.b16 %v919
  %v959 = vunpack.c.l.b16 %v920
  %v960 = vunpack.c.l.b16 %v921
  %v961 = vunpack.c.l.b16 %v922
  %v962 = vunpack.c.l.b16 %v923
  %v963 = vunpack.c.l.b16 %v924
  %v964 = vunpack.c.l.b16 %v925
  %v965 = vunpack.c.l.b16 %v926
  %v966 = vunpack.c.l.b16 %v927
  %v967 = vunpack.c.l.b16 %v928
  %v968 = vunpack.c.l.b16 %v929
  %v969 = vunpack.c.l.b16 %v930
  %v970 = vunpack.c.l.b16 %v931
  %v971 = vunpack.c.l.b16 %v932
  %v972 = vunpack.c.l.b16 %v933
  %v973 = vunpack.c.l.b16 %v934
  %v974 = vpack.c.b16 %v959, %v958
  %v975 = vpack.c.b16 %v961, %v960
  %v976 = vpack.c.b16 %v963, %v962
  %v977 = vpack.c.b16 %v965, %v964
  %v978 = vpack.c.b16 %v967, %v966
  %v979 = vpack.c.b16 %v969, %v968
  %v980 = vpack.c.b16 %v971, %v970
  %v981 = vpack.c.b16 %v973, %v972
  %990 = vmatprep.subr.bf16.mxu0 0
  %991 = vmatpush1.bf16.msra.mxu0 %v981
  %992 = vmatprep.subr.bf16.mxu0 0
  %993 = vmatpush1.bf16.msra.mxu0 %v980
  %994 = vmatprep.subr.bf16.mxu0 0
  %995 = vmatpush1.bf16.msra.mxu0 %v979
  %996 = vmatprep.subr.bf16.mxu0 0
  %997 = vmatpush1.bf16.msra.mxu0 %v978
  %998 = vmatprep.subr.bf16.mxu0 0
  %999 = vmatpush1.bf16.msra.mxu0 %v977
  %1000 = vmatprep.subr.bf16.mxu0 0
  %1001 = vmatpush1.bf16.msra.mxu0 %v976
  %1002 = vmatprep.subr.bf16.mxu0 0
  %1003 = vmatpush1.bf16.msra.mxu0 %v975
  %1004 = vmatprep.subr.bf16.mxu0 0
  %1005 = vmatpush1.bf16.msra.mxu0 %v974
  %1006 = vmatprep.subr.bf16.mxu0 0
  %1007 = vmatpush2.bf16.msra.mxu0 0
  %1008 = vmatprep.subr.bf16.mxu0 0
  %1009 = vmatpush2.bf16.msra.mxu0 0
  %1010 = vmatprep.subr.bf16.mxu0 0
  %1011 = vmatpush2.bf16.msra.mxu0 0
  %1012 = vmatprep.subr.bf16.mxu0 0
  %1013 = vmatpush2.bf16.msra.mxu0 0
  %1014 = vmatprep.subr.bf16.mxu0 0
  %1015 = vmatpush2.bf16.msra.mxu0 0
  %1016 = vmatprep.subr.bf16.mxu0 0
  %1017 = vmatpush2.bf16.msra.mxu0 0
  %1018 = vmatprep.subr.bf16.mxu0 0
  %1019 = vmatpush2.bf16.msra.mxu0 0
  %1020 = vmatprep.subr.bf16.mxu0 0
  %1021 = vmatpush2.bf16.msra.mxu0 0
  %1022 = vmatprep.mubr.bf16.mxu0 0
  %1023 = vmatmul.mubr.bf16.gmra.mxu0 %v915
  %v1024 = vpop.f32.mrf.mxu0
  %v1025 = vadd.f32 %v940, %v1024
  %v1026 = vpop.f32.mrf.mxu0
  %v1027 = vpop.f32.mrf.mxu0
  %v1028 = vadd.f32 %v940, %v1027
  %v1029 = vpop.f32.mrf.mxu0
  %1030 = vmatprep.mubr.bf16.mxu0 0
  %1031 = vmatmul.mubr.bf16.gmra.mxu0 %v916
  %v1032 = vpop.f32.mrf.mxu0
  %v1033 = vadd.f32 %v940, %v1032
  %v1034 = vpop.f32.mrf.mxu0
  %v1035 = vpop.f32.mrf.mxu0
  %v1036 = vadd.f32 %v940, %v1035
  %v1037 = vpop.f32.mrf.mxu0
  %1038 = vmatprep.mubr.bf16.mxu0 0
  %1039 = vmatmul.mubr.bf16.gmra.mxu0 %v917
  %v1040 = vpop.f32.mrf.mxu0
  %v1041 = vadd.f32 %v940, %v1040
  %v1042 = vpop.f32.mrf.mxu0
  %v1043 = vpop.f32.mrf.mxu0
  %v1044 = vadd.f32 %v940, %v1043
  %v1045 = vpop.f32.mrf.mxu0
  %1046 = vmatprep.mubr.bf16.mxu0 0
  %1047 = vmatmul.mubr.bf16.gmra.mxu0 %v918
  %v1048 = vpop.f32.mrf.mxu0
  %v1049 = vadd.f32 %v940, %v1048
  %v1050 = vpop.f32.mrf.mxu0
  %v1051 = vpop.f32.mrf.mxu0
  %v1052 = vadd.f32 %v940, %v1051
  %v1053 = vpop.f32.mrf.mxu0
  %1054 = vdwg.mxu0
  %v1055 = vmax.f32 %v1025, 0.0
  %v1056 = vmax.f32 %v1028, 0.0
  %v1057 = vmax.f32 %v1033, 0.0
  %v1058 = vmax.f32 %v1036, 0.0
  %v1059 = vmax.f32 %v1041, 0.0
  %v1060 = vmax.f32 %v1044, 0.0
  %v1061 = vmax.f32 %v1049, 0.0
  %v1062 = vmax.f32 %v1052, 0.0
  %v1063 = vld [vmem:[%s1] sm:$0xf]
  %v1065 = vrot.slane %v1063, 4
  %vm1067 = vcmask 1043456
  %v1068 = vsel %vm1067, %v1063, %v1065
  %v1069 = vmul.f32 %v1068, %v1055
  %v1070 = vmul.f32 %v1068, %v1056
  %v1071 = vmul.f32 %v1068, %v1057
  %v1072 = vmul.f32 %v1068, %v1058
  %v1073 = vmul.f32 %v1068, %v1059
  %v1074 = vmul.f32 %v1068, %v1060
  %v1075 = vmul.f32 %v1068, %v1061
  %v1076 = vmul.f32 %v1068, %v1062
  %v1077 = vpack.c.bf16 %v1070, %v1069
  %v1078 = vpack.c.bf16 %v1072, %v1071
  %v1079 = vpack.c.bf16 %v1074, %v1073
  %v1080 = vpack.c.bf16 %v1076, %v1075
  %v1081 = vld [vmem:[%s4] sm:$0xf]
  %v1082 = vld [vmem:[%s4 + $0x4] sm:$0xf]
  %v1083 = vld [vmem:[%s4 + $0x8] sm:$0xf]
  %v1084 = vld [vmem:[%s4 + $0xc] sm:$0xf]
  %v1085 = vld [vmem:[%s4 + $0x10] sm:$0xf]
  %v1086 = vld [vmem:[%s4 + $0x14] sm:$0xf]
  %v1087 = vld [vmem:[%s4 + $0x18] sm:$0xf]
  %v1088 = vld [vmem:[%s4 + $0x1c] sm:$0xf]
  %v1089 = vld [vmem:[%s4 + $0x20] sm:$0xf]
  %v1090 = vld [vmem:[%s4 + $0x24] sm:$0xf]
  %v1091 = vld [vmem:[%s4 + $0x28] sm:$0xf]
  %v1092 = vld [vmem:[%s4 + $0x2c] sm:$0xf]
  %v1093 = vld [vmem:[%s4 + $0x30] sm:$0xf]
  %v1094 = vld [vmem:[%s4 + $0x34] sm:$0xf]
  %v1095 = vld [vmem:[%s4 + $0x38] sm:$0xf]
  %v1096 = vld [vmem:[%s4 + $0x3c] sm:$0xf]
  %v1097 = vld [vmem:[%s5] sm:$0x1]
  %v1099 = vlaneseq
  %v1100 = vshrl.u32 %v1099, 7
  %v1101 = vsub.s32 0, %v1100
  %v1102 = vrot.slane %v1097, %v1101
  %v1120 = vunpack.c.l.b16 %v1081
  %v1121 = vunpack.c.l.b16 %v1082
  %v1122 = vunpack.c.l.b16 %v1083
  %v1123 = vunpack.c.l.b16 %v1084
  %v1124 = vunpack.c.l.b16 %v1085
  %v1125 = vunpack.c.l.b16 %v1086
  %v1126 = vunpack.c.l.b16 %v1087
  %v1127 = vunpack.c.l.b16 %v1088
  %v1128 = vunpack.c.l.b16 %v1089
  %v1129 = vunpack.c.l.b16 %v1090
  %v1130 = vunpack.c.l.b16 %v1091
  %v1131 = vunpack.c.l.b16 %v1092
  %v1132 = vunpack.c.l.b16 %v1093
  %v1133 = vunpack.c.l.b16 %v1094
  %v1134 = vunpack.c.l.b16 %v1095
  %v1135 = vunpack.c.l.b16 %v1096
  %v1136 = vpack.c.b16 %v1121, %v1120
  %v1137 = vpack.c.b16 %v1123, %v1122
  %v1138 = vpack.c.b16 %v1125, %v1124
  %v1139 = vpack.c.b16 %v1127, %v1126
  %v1140 = vpack.c.b16 %v1129, %v1128
  %v1141 = vpack.c.b16 %v1131, %v1130
  %v1142 = vpack.c.b16 %v1133, %v1132
  %v1143 = vpack.c.b16 %v1135, %v1134
  %1152 = vmatprep.subr.bf16.mxu0 0
  %1153 = vmatpush1.bf16.msra.mxu0 %v1143
  %1154 = vmatprep.subr.bf16.mxu0 0
  %1155 = vmatpush1.bf16.msra.mxu0 %v1142
  %1156 = vmatprep.subr.bf16.mxu0 0
  %1157 = vmatpush1.bf16.msra.mxu0 %v1141
  %1158 = vmatprep.subr.bf16.mxu0 0
  %1159 = vmatpush1.bf16.msra.mxu0 %v1140
  %1160 = vmatprep.subr.bf16.mxu0 0
  %1161 = vmatpush1.bf16.msra.mxu0 %v1139
  %1162 = vmatprep.subr.bf16.mxu0 0
  %1163 = vmatpush1.bf16.msra.mxu0 %v1138
  %1164 = vmatprep.subr.bf16.mxu0 0
  %1165 = vmatpush1.bf16.msra.mxu0 %v1137
  %1166 = vmatprep.subr.bf16.mxu0 0
  %1167 = vmatpush1.bf16.msra.mxu0 %v1136
  %1168 = vmatprep.subr.bf16.mxu0 0
  %1169 = vmatpush2.bf16.msra.mxu0 0
  %1170 = vmatprep.subr.bf16.mxu0 0
  %1171 = vmatpush2.bf16.msra.mxu0 0
  %1172 = vmatprep.subr.bf16.mxu0 0
  %1173 = vmatpush2.bf16.msra.mxu0 0
  %1174 = vmatprep.subr.bf16.mxu0 0
  %1175 = vmatpush2.bf16.msra.mxu0 0
  %1176 = vmatprep.subr.bf16.mxu0 0
  %1177 = vmatpush2.bf16.msra.mxu0 0
  %1178 = vmatprep.subr.bf16.mxu0 0
  %1179 = vmatpush2.bf16.msra.mxu0 0
  %1180 = vmatprep.subr.bf16.mxu0 0
  %1181 = vmatpush2.bf16.msra.mxu0 0
  %1182 = vmatprep.subr.bf16.mxu0 0
  %1183 = vmatpush2.bf16.msra.mxu0 0
  %1184 = vmatprep.mubr.bf16.mxu0 0
  %1185 = vmatmul.mubr.bf16.gmra.mxu0 %v1077
  %v1186 = vpop.f32.mrf.mxu0
  %v1187 = vadd.f32 %v1102, %v1186
  %v1188 = vpop.f32.mrf.mxu0
  %v1189 = vpop.f32.mrf.mxu0
  %v1190 = vadd.f32 %v1102, %v1189
  %v1191 = vpop.f32.mrf.mxu0
  %1192 = vmatprep.mubr.bf16.mxu0 0
  %1193 = vmatmul.mubr.bf16.gmra.mxu0 %v1078
  %v1194 = vpop.f32.mrf.mxu0
  %v1195 = vadd.f32 %v1102, %v1194
  %v1196 = vpop.f32.mrf.mxu0
  %v1197 = vpop.f32.mrf.mxu0
  %v1198 = vadd.f32 %v1102, %v1197
  %v1199 = vpop.f32.mrf.mxu0
  %1200 = vmatprep.mubr.bf16.mxu0 0
  %1201 = vmatmul.mubr.bf16.gmra.mxu0 %v1079
  %v1202 = vpop.f32.mrf.mxu0
  %v1203 = vadd.f32 %v1102, %v1202
  %v1204 = vpop.f32.mrf.mxu0
  %v1205 = vpop.f32.mrf.mxu0
  %v1206 = vadd.f32 %v1102, %v1205
  %v1207 = vpop.f32.mrf.mxu0
  %1208 = vmatprep.mubr.bf16.mxu0 0
  %1209 = vmatmul.mubr.bf16.gmra.mxu0 %v1080
  %v1210 = vpop.f32.mrf.mxu0
  %v1211 = vadd.f32 %v1102, %v1210
  %v1212 = vpop.f32.mrf.mxu0
  %v1213 = vpop.f32.mrf.mxu0
  %v1214 = vadd.f32 %v1102, %v1213
  %v1215 = vpop.f32.mrf.mxu0
  %1216 = vdwg.mxu0
  %v1217 = vmax.f32 %v1187, 0.0
  %v1218 = vmax.f32 %v1190, 0.0
  %v1219 = vmax.f32 %v1195, 0.0
  %v1220 = vmax.f32 %v1198, 0.0
  %v1221 = vmax.f32 %v1203, 0.0
  %v1222 = vmax.f32 %v1206, 0.0
  %v1223 = vmax.f32 %v1211, 0.0
  %v1224 = vmax.f32 %v1214, 0.0
  %v1225 = vpack.c.bf16 %v1218, %v1217
  %v1226 = vpack.c.bf16 %v1220, %v1219
  %v1227 = vpack.c.bf16 %v1222, %v1221
  %v1228 = vpack.c.bf16 %v1224, %v1223
  %v1229 = vld [vmem:[%s6] sm:$0xf]
  %v1230 = vld [vmem:[%s6 + $0x4] sm:$0xf]
  %v1231 = vld [vmem:[%s6 + $0x8] sm:$0xf]
  %v1232 = vld [vmem:[%s6 + $0xc] sm:$0xf]
  %v1233 = vld [vmem:[%s6 + $0x10] sm:$0xf]
  %v1234 = vld [vmem:[%s6 + $0x14] sm:$0xf]
  %v1235 = vld [vmem:[%s6 + $0x18] sm:$0xf]
  %v1236 = vld [vmem:[%s6 + $0x1c] sm:$0xf]
  %v1237 = vld [vmem:[%s6 + $0x20] sm:$0xf]
  %v1238 = vld [vmem:[%s6 + $0x24] sm:$0xf]
  %v1239 = vld [vmem:[%s6 + $0x28] sm:$0xf]
  %v1240 = vld [vmem:[%s6 + $0x2c] sm:$0xf]
  %v1241 = vld [vmem:[%s6 + $0x30] sm:$0xf]
  %v1242 = vld [vmem:[%s6 + $0x34] sm:$0xf]
  %v1243 = vld [vmem:[%s6 + $0x38] sm:$0xf]
  %v1244 = vld [vmem:[%s6 + $0x3c] sm:$0xf]
  %v1245 = vld [vmem:[%s7] sm:$0x1]
  %v1247 = vlaneseq
  %v1248 = vshrl.u32 %v1247, 7
  %v1249 = vsub.s32 0, %v1248
  %v1250 = vrot.slane %v1245, %v1249
  %v1268 = vunpack.c.l.b16 %v1229
  %v1269 = vunpack.c.l.b16 %v1230
  %v1270 = vunpack.c.l.b16 %v1231
  %v1271 = vunpack.c.l.b16 %v1232
  %v1272 = vunpack.c.l.b16 %v1233
  %v1273 = vunpack.c.l.b16 %v1234
  %v1274 = vunpack.c.l.b16 %v1235
  %v1275 = vunpack.c.l.b16 %v1236
  %v1276 = vunpack.c.l.b16 %v1237
  %v1277 = vunpack.c.l.b16 %v1238
  %v1278 = vunpack.c.l.b16 %v1239
  %v1279 = vunpack.c.l.b16 %v1240
  %v1280 = vunpack.c.l.b16 %v1241
  %v1281 = vunpack.c.l.b16 %v1242
  %v1282 = vunpack.c.l.b16 %v1243
  %v1283 = vunpack.c.l.b16 %v1244
  %v1284 = vpack.c.b16 %v1269, %v1268
  %v1285 = vpack.c.b16 %v1271, %v1270
  %v1286 = vpack.c.b16 %v1273, %v1272
  %v1287 = vpack.c.b16 %v1275, %v1274
  %v1288 = vpack.c.b16 %v1277, %v1276
  %v1289 = vpack.c.b16 %v1279, %v1278
  %v1290 = vpack.c.b16 %v1281, %v1280
  %v1291 = vpack.c.b16 %v1283, %v1282
  %1300 = vmatprep.subr.bf16.mxu0 0
  %1301 = vmatpush1.bf16.msra.mxu0 %v1291
  %1302 = vmatprep.subr.bf16.mxu0 0
  %1303 = vmatpush1.bf16.msra.mxu0 %v1290
  %1304 = vmatprep.subr.bf16.mxu0 0
  %1305 = vmatpush1.bf16.msra.mxu0 %v1289
  %1306 = vmatprep.subr.bf16.mxu0 0
  %1307 = vmatpush1.bf16.msra.mxu0 %v1288
  %1308 = vmatprep.subr.bf16.mxu0 0
  %1309 = vmatpush1.bf16.msra.mxu0 %v1287
  %1310 = vmatprep.subr.bf16.mxu0 0
  %1311 = vmatpush1.bf16.msra.mxu0 %v1286
  %1312 = vmatprep.subr.bf16.mxu0 0
  %1313 = vmatpush1.bf16.msra.mxu0 %v1285
  %1314 = vmatprep.subr.bf16.mxu0 0
  %1315 = vmatpush1.bf16.msra.mxu0 %v1284
  %1316 = vmatprep.subr.bf16.mxu0 0
  %1317 = vmatpush2.bf16.msra.mxu0 0
  %1318 = vmatprep.subr.bf16.mxu0 0
  %1319 = vmatpush2.bf16.msra.mxu0 0
  %1320 = vmatprep.subr.bf16.mxu0 0
  %1321 = vmatpush2.bf16.msra.mxu0 0
  %1322 = vmatprep.subr.bf16.mxu0 0
  %1323 = vmatpush2.bf16.msra.mxu0 0
  %1324 = vmatprep.subr.bf16.mxu0 0
  %1325 = vmatpush2.bf16.msra.mxu0 0
  %1326 = vmatprep.subr.bf16.mxu0 0
  %1327 = vmatpush2.bf16.msra.mxu0 0
  %1328 = vmatprep.subr.bf16.mxu0 0
  %1329 = vmatpush2.bf16.msra.mxu0 0
  %1330 = vmatprep.subr.bf16.mxu0 0
  %1331 = vmatpush2.bf16.msra.mxu0 0
  %1332 = vmatprep.mubr.bf16.mxu0 0
  %1333 = vmatmul.mubr.bf16.gmra.mxu0 %v1225
  %v1334 = vpop.f32.mrf.mxu0
  %v1335 = vadd.f32 %v1250, %v1334
  %v1336 = vpop.f32.mrf.mxu0
  %v1337 = vpop.f32.mrf.mxu0
  %v1338 = vadd.f32 %v1250, %v1337
  %v1339 = vpop.f32.mrf.mxu0
  %1340 = vmatprep.mubr.bf16.mxu0 0
  %1341 = vmatmul.mubr.bf16.gmra.mxu0 %v1226
  %v1342 = vpop.f32.mrf.mxu0
  %v1343 = vadd.f32 %v1250, %v1342
  %v1344 = vpop.f32.mrf.mxu0
  %v1345 = vpop.f32.mrf.mxu0
  %v1346 = vadd.f32 %v1250, %v1345
  %v1347 = vpop.f32.mrf.mxu0
  %1348 = vmatprep.mubr.bf16.mxu0 0
  %1349 = vmatmul.mubr.bf16.gmra.mxu0 %v1227
  %v1350 = vpop.f32.mrf.mxu0
  %v1351 = vadd.f32 %v1250, %v1350
  %v1352 = vpop.f32.mrf.mxu0
  %v1353 = vpop.f32.mrf.mxu0
  %v1354 = vadd.f32 %v1250, %v1353
  %v1355 = vpop.f32.mrf.mxu0
  %1356 = vmatprep.mubr.bf16.mxu0 0
  %1357 = vmatmul.mubr.bf16.gmra.mxu0 %v1228
  %v1358 = vpop.f32.mrf.mxu0
  %v1359 = vadd.f32 %v1250, %v1358
  %v1360 = vpop.f32.mrf.mxu0
  %v1361 = vpop.f32.mrf.mxu0
  %v1362 = vadd.f32 %v1250, %v1361
  %v1363 = vpop.f32.mrf.mxu0
  %1364 = vdwg.mxu0
  %1365 = vst [vmem:[%s8] sm:$0xff] %v1335
  %1366 = vst [vmem:[%s8 + $0x8] sm:$0xff] %v1338
  %1367 = vst [vmem:[%s8 + $0x10] sm:$0xff] %v1343
  %1368 = vst [vmem:[%s8 + $0x18] sm:$0xff] %v1346
  %1369 = vst [vmem:[%s8 + $0x20] sm:$0xff] %v1351
  %1370 = vst [vmem:[%s8 + $0x28] sm:$0xff] %v1354
  %1371 = vst [vmem:[%s8 + $0x30] sm:$0xff] %v1359
  %1372 = vst [vmem:[%s8 + $0x38] sm:$0xff] %v1362
  // Predicated region
  $region34: #{quantile_head_forward.3} parent=0 // pred_check
    _
  $region35: #{quantile_head_forward.3} parent=0 // pred_check_branch
    %1374 = sbr.rel (0) target = $region37
  $region36: #{quantile_head_forward.3} parent=0 // pred_region
    _
  $region37: #{quantile_head_forward.3} parent=0 // pred_fallthru
    _
  // Predicated region
  $region38: #{quantile_head_forward.3} parent=0 // pred_check
    _
  $region39: #{quantile_head_forward.3} parent=0 // pred_check_branch
    %1376 = sbr.rel (0) target = $region41
  $region40: #{quantile_head_forward.3} parent=0 // pred_region
    _
  $region41: #{quantile_head_forward.3} parent=0 // pred_fallthru
    _

</llo_original>
